<compile_context>
chip_gen: v7x
topology: tpu7x:2x2x1
jax: 0.10.0
libtpu: 0.0.40
codegen_flags: <defaults>
</compile_context>

<pallas_src>
import jax
import jax.numpy as jnp
from jax.experimental import pallas as pl
from jax.experimental.pallas import tpu as pltpu

NEG_SLOPE = 0.01       # F.leaky_relu default negative_slope
LANE = 128
SUBLANE = 8
_MIN_SPLIT_ROWS = 256  # batches >= 2*this get >=2 parallel blocks (v7x 2 TCs)


def _round_up(x, m):
    return (x + m - 1) // m * m


def _leaky_relu(x):
    # Equivalent to leaky_relu for slope < 1; one VPU max instead of cmp+select.
    return jnp.maximum(x, NEG_SLOPE * x)


def _make_mlp_kernel(use_bf16):
    if use_bf16:
        def cast(v):
            return v.astype(jnp.bfloat16)
    else:
        def cast(v):
            return v

    def kernel(x_ref,
               w1_ref, b1_ref,
               w2_ref, b2_ref,
               w3_ref, b3_ref,
               wo_ref, bo_ref,
               o_ref):
        h = jnp.dot(cast(x_ref[...]), cast(w1_ref[...]),
                    preferred_element_type=jnp.float32) + b1_ref[...]
        h = _leaky_relu(h)

        h = jnp.dot(cast(h), cast(w2_ref[...]),
                    preferred_element_type=jnp.float32) + b2_ref[...]
        h = _leaky_relu(h)

        h = jnp.dot(cast(h), cast(w3_ref[...]),
                    preferred_element_type=jnp.float32) + b3_ref[...]
        h = _leaky_relu(h)

        # Fused output heads: single MXU pass, single store of the true width.
        o = jnp.dot(cast(h), cast(wo_ref[...]),
                    preferred_element_type=jnp.float32) + bo_ref[...]
        o_ref[...] = o.astype(o_ref.dtype)

    return kernel


def prepare_params(params, n_states, n_actions, *, weight_dtype=jnp.float32):
    """Fuse the two output heads and pad only the hidden (VMEM-only) dims.

    w1 keeps unpadded rows (= n_states); wo/bo keep unpadded output columns
    (= n_actions + n_states).  Hidden dims are zero-padded to 128 lanes so the
    intermediate activations are lane-dense; padded lanes stay exactly zero.
    Call once; reuse across model_forward calls.
    """
    d_in = n_states
    h1 = n_states * 3
    h2 = n_states * 2
    h3 = int(n_states * 1.5)
    d_out = n_actions + n_states

    h1_p = _round_up(h1, LANE)
    h2_p = _round_up(h2, LANE)
    h3_p = _round_up(h3, LANE)

    def pad_w(w, rows, cols, rows_p, cols_p):
        return jnp.pad(w, ((0, rows_p - rows), (0, cols_p - cols))).astype(weight_dtype)

    def pad_b(b, cols, cols_p):
        return jnp.pad(b, ((0, 0), (0, cols_p - cols)))  # biases stay f32

    wo = jnp.concatenate([params["wo1"], params["wo2"]], axis=1)
    bo = jnp.concatenate([params["bo1"], params["bo2"]], axis=1)

    return {
        "w1": pad_w(params["w1"], d_in, h1, d_in, h1_p),   # rows unpadded
        "b1": pad_b(params["b1"], h1, h1_p),
        "w2": pad_w(params["w2"], h1, h2, h1_p, h2_p),
        "b2": pad_b(params["b2"], h2, h2_p),
        "w3": pad_w(params["w3"], h2, h3, h2_p, h3_p),
        "b3": pad_b(params["b3"], h3, h3_p),
        "wo": pad_w(wo, h3, d_out, h3_p, d_out),           # cols unpadded
        "bo": bo.astype(jnp.float32),
    }


def _choose_blocking(B, max_block_b):
    """Pick (block_b, num_blocks, padded_batch)."""
    bp8 = _round_up(B, SUBLANE)
    if bp8 <= max_block_b:
        # Force >=2 blocks for mid-size batches so the parallel grid can use
        # both v7x TensorCores; tiny batches stay a single tile.
        num_blocks = 2 if bp8 >= 2 * _MIN_SPLIT_ROWS else 1
    else:
        num_blocks = -(-bp8 // max_block_b)
    block_b = _round_up(-(-bp8 // num_blocks), SUBLANE)
    return block_b, num_blocks, block_b * num_blocks


def model_forward(x, padded_params, n_states, n_actions, *,
                  max_block_b=1024, use_bf16=False):
    """x: (B, n_states) f32.  Returns (o1 (B, n_actions), o2 (B, n_states))."""
    B, d_in = x.shape
    assert d_in == n_states, (d_in, n_states)
    d_out = n_actions + n_states

    block_b, num_blocks, Bp = _choose_blocking(B, max_block_b)
    grid = (num_blocks,)

    # Only pad the batch when the blocking doesn't already divide it (the pad
    # is <~ 8*num_blocks rows; power-of-2 batches skip this pass entirely).
    x_in = x if Bp == B else jnp.pad(x, ((0, Bp - B), (0, 0)))

    p = padded_params
    args = (x_in,
            p["w1"], p["b1"],
            p["w2"], p["b2"],
            p["w3"], p["b3"],
            p["wo"], p["bo"])

    def _batch_tile(i):
        return (i, 0)

    def _fixed(i):
        return (0, 0)

    # x block: full (unpadded) feature dim; batch dim tiled.
    in_specs = [pl.BlockSpec((block_b, d_in), _batch_tile)]
    # Weights/biases: full-array blocks, resident across all batch tiles.
    # TODO(synk): pipeline_mode=pl.Buffered(1) would drop their redundant
    # double buffer (~hundreds of KiB); skipped to keep compile risk at zero.
    in_specs += [pl.BlockSpec(a.shape, _fixed) for a in args[1:]]

    out_specs = pl.BlockSpec((block_b, d_out), _batch_tile)
    out_shape = jax.ShapeDtypeStruct((Bp, d_out), jnp.float32)

    h1_p = p["w1"].shape[1]
    h2_p = p["w2"].shape[1]
    h3_p = p["w3"].shape[1]
    flops = 2 * Bp * (d_in * h1_p + h1_p * h2_p + h2_p * h3_p + h3_p * d_out)
    weight_bytes = sum(int(a.size) * a.dtype.itemsize for a in args[1:])
    bytes_accessed = (int(x_in.size) * x_in.dtype.itemsize
                      + Bp * d_out * 4
                      + weight_bytes)  # weights fetched once (constant index_map)
    cost = pl.CostEstimate(flops=flops, transcendentals=0,
                           bytes_accessed=bytes_accessed)

    out = pl.pallas_call(
        _make_mlp_kernel(use_bf16),
        out_shape=out_shape,
        grid=grid,
        in_specs=in_specs,
        out_specs=out_specs,
        compiler_params=pltpu.CompilerParams(
            dimension_semantics=("parallel",)),
        cost_estimate=cost,
    )(*args)

    o1 = out[:B, :n_actions]
    o2 = out[:B, n_actions:]
    return o1, o2


def init_params(key, n_states, n_actions):
    """Deterministic init mirroring torch.nn.Linear shapes.

    torch Linear(in, out) has weight (out, in); we store the transpose
    (in, out) so the kernel computes x @ W + b directly.
    """
    dims = [
        ("1", n_states, n_states * 3),
        ("2", n_states * 3, n_states * 2),
        ("3", n_states * 2, int(n_states * 1.5)),
        ("o1", int(n_states * 1.5), n_actions),
        ("o2", int(n_states * 1.5), n_states),
    ]
    params = {}
    for name, fan_in, fan_out in dims:
        key, kw, kb = jax.random.split(key, 3)
        bound = 1.0 / float(jnp.sqrt(fan_in))
        w = jax.random.uniform(kw, (fan_in, fan_out), jnp.float32, -bound, bound)
        b = jax.random.uniform(kb, (1, fan_out), jnp.float32, -bound, bound)
        prefix = "w" if not name.startswith("o") else "wo"
        bprefix = "b" if not name.startswith("o") else "bo"
        suffix = name if not name.startswith("o") else name[1:]
        params[prefix + suffix] = w
        params[bprefix + suffix] = b
    return params


def _reference(x, params):
    def lrelu(v):
        return jnp.where(v > 0, v, NEG_SLOPE * v)
    h = lrelu(x @ params["w1"] + params["b1"])
    h = lrelu(h @ params["w2"] + params["b2"])
    h = lrelu(h @ params["w3"] + params["b3"])
    return h @ params["wo1"] + params["bo1"], h @ params["wo2"] + params["bo2"]


if __name__ == "__main__":
    n_states = 32
    n_actions = 3

    key = jax.random.PRNGKey(0)
    key, kp = jax.random.split(key)
    params = init_params(kp, n_states, n_actions)
    padded = prepare_params(params, n_states, n_actions)

    # Case 1: small batch (single tile, grid=(1,)).
    key, kx = jax.random.split(key)
    x_small = jax.random.normal(kx, (8, n_states), jnp.float32)
    o1, o2 = model_forward(x_small, padded, n_states, n_actions)
    jax.block_until_ready((o1, o2))
    assert o1.shape == (8, n_actions), o1.shape
    assert o2.shape == (8, n_states), o2.shape
    r1, r2 = _reference(x_small, params)
    assert jnp.allclose(o1, r1, atol=1e-4, rtol=1e-4)
    assert jnp.allclose(o2, r2, atol=1e-4, rtol=1e-4)

    # Case 2: batch that exercises the multi-block parallel grid + batch pad.
    key, kx2 = jax.random.split(key)
    x_big = jax.random.normal(kx2, (520, n_states), jnp.float32)
    o1b, o2b = model_forward(x_big, padded, n_states, n_actions)
    jax.block_until_ready((o1b, o2b))
    assert o1b.shape == (520, n_actions), o1b.shape
    assert o2b.shape == (520, n_states), o2b.shape
    r1b, r2b = _reference(x_big, params)
    assert jnp.allclose(o1b, r1b, atol=1e-4, rtol=1e-4)
    assert jnp.allclose(o2b, r2b, atol=1e-4, rtol=1e-4)

    print("KERNEL_OK")
</pallas_src>

<mosaic_0001>
module attributes {stable_mosaic.version = 11 : i64} {
  func.func @kernel(%arg0: i32, %arg1: memref<8x32xf32, #tpu.memory_space<vmem>>, %arg2: memref<32x128xf32, #tpu.memory_space<vmem>>, %arg3: memref<1x128xf32, #tpu.memory_space<vmem>>, %arg4: memref<128x128xf32, #tpu.memory_space<vmem>>, %arg5: memref<1x128xf32, #tpu.memory_space<vmem>>, %arg6: memref<128x128xf32, #tpu.memory_space<vmem>>, %arg7: memref<1x128xf32, #tpu.memory_space<vmem>>, %arg8: memref<128x35xf32, #tpu.memory_space<vmem>>, %arg9: memref<1x35xf32, #tpu.memory_space<vmem>>, %arg10: memref<8x35xf32, #tpu.memory_space<vmem>>) attributes {dimension_semantics = [#tpu.dimension_semantics<parallel>], iteration_bounds = array<i64: 1>, scalar_prefetch = 0 : i64, scratch_operands = 0 : i64, tpu.core_type = #tpu.core_type<tc>, window_params = [{transform_indices = @transform_0, window_bounds = array<i64: 8, 32>}, {pipeline_mode = #tpu.pipeline_mode<synchronous>, transform_indices = @transform_1, window_bounds = array<i64: 32, 128>}, {pipeline_mode = #tpu.pipeline_mode<synchronous>, transform_indices = @transform_2, window_bounds = array<i64: 1, 128>}, {pipeline_mode = #tpu.pipeline_mode<synchronous>, transform_indices = @transform_3, window_bounds = array<i64: 128, 128>}, {pipeline_mode = #tpu.pipeline_mode<synchronous>, transform_indices = @transform_4, window_bounds = array<i64: 1, 128>}, {pipeline_mode = #tpu.pipeline_mode<synchronous>, transform_indices = @transform_5, window_bounds = array<i64: 128, 128>}, {pipeline_mode = #tpu.pipeline_mode<synchronous>, transform_indices = @transform_6, window_bounds = array<i64: 1, 128>}, {pipeline_mode = #tpu.pipeline_mode<synchronous>, transform_indices = @transform_7, window_bounds = array<i64: 128, 35>}, {pipeline_mode = #tpu.pipeline_mode<synchronous>, transform_indices = @transform_8, window_bounds = array<i64: 1, 35>}, {transform_indices = @transform_9, window_bounds = array<i64: 8, 35>}]} {
    %c0 = arith.constant 0 : index
    %c0_0 = arith.constant 0 : index
    %0 = vector.load %arg1[%c0, %c0_0] : memref<8x32xf32, #tpu.memory_space<vmem>>, vector<8x32xf32>
    %c0_1 = arith.constant 0 : index
    %c0_2 = arith.constant 0 : index
    %1 = vector.load %arg2[%c0_1, %c0_2] : memref<32x128xf32, #tpu.memory_space<vmem>>, vector<32x128xf32>
    %cst = arith.constant dense<0.000000e+00> : vector<8x128xf32>
    %2 = tpu.matmul %0, %1, %cst {dimension_numbers = #tpu.dot_dimension_numbers<[1], [0], [0], [1], [0, 0, 1, 1], [], []>} : vector<8x32xf32>, vector<32x128xf32>, vector<8x128xf32> -> vector<8x128xf32>
    %c0_3 = arith.constant 0 : index
    %c0_4 = arith.constant 0 : index
    %3 = vector.load %arg3[%c0_3, %c0_4] : memref<1x128xf32, #tpu.memory_space<vmem>>, vector<1x128xf32>
    %4 = vector.broadcast %3 : vector<1x128xf32> to vector<8x128xf32>
    %5 = arith.addf %2, %4 : vector<8x128xf32>
    %cst_5 = arith.constant 0.00999999977 : f32
    %6 = vector.broadcast %cst_5 : f32 to vector<8x128xf32>
    %7 = arith.mulf %6, %5 : vector<8x128xf32>
    %8 = arith.maximumf %5, %7 : vector<8x128xf32>
    %c0_6 = arith.constant 0 : index
    %c0_7 = arith.constant 0 : index
    %9 = vector.load %arg4[%c0_6, %c0_7] : memref<128x128xf32, #tpu.memory_space<vmem>>, vector<128x128xf32>
    %cst_8 = arith.constant dense<0.000000e+00> : vector<8x128xf32>
    %10 = tpu.matmul %8, %9, %cst_8 {dimension_numbers = #tpu.dot_dimension_numbers<[1], [0], [0], [1], [0, 0, 1, 1], [], []>} : vector<8x128xf32>, vector<128x128xf32>, vector<8x128xf32> -> vector<8x128xf32>
    %c0_9 = arith.constant 0 : index
    %c0_10 = arith.constant 0 : index
    %11 = vector.load %arg5[%c0_9, %c0_10] : memref<1x128xf32, #tpu.memory_space<vmem>>, vector<1x128xf32>
    %12 = vector.broadcast %11 : vector<1x128xf32> to vector<8x128xf32>
    %13 = arith.addf %10, %12 : vector<8x128xf32>
    %cst_11 = arith.constant 0.00999999977 : f32
    %14 = vector.broadcast %cst_11 : f32 to vector<8x128xf32>
    %15 = arith.mulf %14, %13 : vector<8x128xf32>
    %16 = arith.maximumf %13, %15 : vector<8x128xf32>
    %c0_12 = arith.constant 0 : index
    %c0_13 = arith.constant 0 : index
    %17 = vector.load %arg6[%c0_12, %c0_13] : memref<128x128xf32, #tpu.memory_space<vmem>>, vector<128x128xf32>
    %cst_14 = arith.constant dense<0.000000e+00> : vector<8x128xf32>
    %18 = tpu.matmul %16, %17, %cst_14 {dimension_numbers = #tpu.dot_dimension_numbers<[1], [0], [0], [1], [0, 0, 1, 1], [], []>} : vector<8x128xf32>, vector<128x128xf32>, vector<8x128xf32> -> vector<8x128xf32>
    %c0_15 = arith.constant 0 : index
    %c0_16 = arith.constant 0 : index
    %19 = vector.load %arg7[%c0_15, %c0_16] : memref<1x128xf32, #tpu.memory_space<vmem>>, vector<1x128xf32>
    %20 = vector.broadcast %19 : vector<1x128xf32> to vector<8x128xf32>
    %21 = arith.addf %18, %20 : vector<8x128xf32>
    %cst_17 = arith.constant 0.00999999977 : f32
    %22 = vector.broadcast %cst_17 : f32 to vector<8x128xf32>
    %23 = arith.mulf %22, %21 : vector<8x128xf32>
    %24 = arith.maximumf %21, %23 : vector<8x128xf32>
    %c0_18 = arith.constant 0 : index
    %c0_19 = arith.constant 0 : index
    %25 = vector.load %arg8[%c0_18, %c0_19] : memref<128x35xf32, #tpu.memory_space<vmem>>, vector<128x35xf32>
    %cst_20 = arith.constant dense<0.000000e+00> : vector<8x35xf32>
    %26 = tpu.matmul %24, %25, %cst_20 {dimension_numbers = #tpu.dot_dimension_numbers<[1], [0], [0], [1], [0, 0, 1, 1], [], []>} : vector<8x128xf32>, vector<128x35xf32>, vector<8x35xf32> -> vector<8x35xf32>
    %c0_21 = arith.constant 0 : index
    %c0_22 = arith.constant 0 : index
    %27 = vector.load %arg9[%c0_21, %c0_22] : memref<1x35xf32, #tpu.memory_space<vmem>>, vector<1x35xf32>
    %28 = vector.broadcast %27 : vector<1x35xf32> to vector<8x35xf32>
    %29 = arith.addf %26, %28 : vector<8x35xf32>
    %c0_23 = arith.constant 0 : index
    %c0_24 = arith.constant 0 : index
    %30 = vector.load %arg10[%c0_23, %c0_24] : memref<8x35xf32, #tpu.memory_space<vmem>>, vector<8x35xf32>
    tpu.vector_store %arg10[%c0_23, %c0_24], %29 {strides = array<i32>} : memref<8x35xf32, #tpu.memory_space<vmem>>, vector<8x35xf32>,
    return
  }
  func.func @transform_0(%arg0: i32) -> (i32, i32) {
    %c0_i32 = arith.constant 0 : i32
    %c0_i32_0 = arith.constant 0 : i32
    return %arg0, %c0_i32 : i32, i32
  }
  func.func @transform_1(%arg0: i32) -> (i32, i32) {
    %c0_i32 = arith.constant 0 : i32
    %c0_i32_0 = arith.constant 0 : i32
    %c0_i32_1 = arith.constant 0 : i32
    return %c0_i32, %c0_i32_0 : i32, i32
  }
  func.func @transform_2(%arg0: i32) -> (i32, i32) {
    %c0_i32 = arith.constant 0 : i32
    %c0_i32_0 = arith.constant 0 : i32
    %c0_i32_1 = arith.constant 0 : i32
    return %c0_i32, %c0_i32_0 : i32, i32
  }
  func.func @transform_3(%arg0: i32) -> (i32, i32) {
    %c0_i32 = arith.constant 0 : i32
    %c0_i32_0 = arith.constant 0 : i32
    %c0_i32_1 = arith.constant 0 : i32
    return %c0_i32, %c0_i32_0 : i32, i32
  }
  func.func @transform_4(%arg0: i32) -> (i32, i32) {
    %c0_i32 = arith.constant 0 : i32
    %c0_i32_0 = arith.constant 0 : i32
    %c0_i32_1 = arith.constant 0 : i32
    return %c0_i32, %c0_i32_0 : i32, i32
  }
  func.func @transform_5(%arg0: i32) -> (i32, i32) {
    %c0_i32 = arith.constant 0 : i32
    %c0_i32_0 = arith.constant 0 : i32
    %c0_i32_1 = arith.constant 0 : i32
    return %c0_i32, %c0_i32_0 : i32, i32
  }
  func.func @transform_6(%arg0: i32) -> (i32, i32) {
    %c0_i32 = arith.constant 0 : i32
    %c0_i32_0 = arith.constant 0 : i32
    %c0_i32_1 = arith.constant 0 : i32
    return %c0_i32, %c0_i32_0 : i32, i32
  }
  func.func @transform_7(%arg0: i32) -> (i32, i32) {
    %c0_i32 = arith.constant 0 : i32
    %c0_i32_0 = arith.constant 0 : i32
    %c0_i32_1 = arith.constant 0 : i32
    return %c0_i32, %c0_i32_0 : i32, i32
  }
  func.func @transform_8(%arg0: i32) -> (i32, i32) {
    %c0_i32 = arith.constant 0 : i32
    %c0_i32_0 = arith.constant 0 : i32
    %c0_i32_1 = arith.constant 0 : i32
    return %c0_i32, %c0_i32_0 : i32, i32
  }
  func.func @transform_9(%arg0: i32) -> (i32, i32) {
    %c0_i32 = arith.constant 0 : i32
    %c0_i32_0 = arith.constant 0 : i32
    return %arg0, %c0_i32 : i32, i32
  }
}

</mosaic_0001>

<llo_original>
// kernel: tpu_custom_call.1
$region0: #{tpu_custom_call.1}
  #allocation0 [shape = 'u32[]', space=smem, size = 0x4, offset = 0x4, fixed_abs, tag = 'smem constant byte address 0x4 - core index']
  #allocation1 [shape = 'u32[144,128]{1,0:T(1,128)}', space=vmem, size = 0x12000, scoped, tag = 'internal scratch']
  %s0 = inlined_call_operand.vmem [shape: f32[8,32], index: 0, kind: input, shape index: {}]
  %s1 = inlined_call_operand.vmem [shape: f32[32,128], index: 1, kind: input, shape index: {}]
  %s2 = inlined_call_operand.vmem [shape: f32[1,128], index: 2, kind: input, shape index: {}]
  %s3 = inlined_call_operand.vmem [shape: f32[128,128], index: 3, kind: input, shape index: {}]
  %s4 = inlined_call_operand.vmem [shape: f32[1,128], index: 4, kind: input, shape index: {}]
  %s5 = inlined_call_operand.hbm [shape: f32[128,128], index: 5, kind: input, shape index: {}]
  %s6 = inlined_call_operand.vmem [shape: f32[1,128], index: 6, kind: input, shape index: {}]
  %s7 = inlined_call_operand.vmem [shape: f32[128,35], index: 7, kind: input, shape index: {}]
  %s8 = inlined_call_operand.vmem [shape: f32[1,35], index: 8, kind: input, shape index: {}]
  %s9 = inlined_call_operand.hbm [shape: f32[8,35], index: 9, kind: output, shape index: {}]
  %s10 = sld [smem:[#allocation0]]
  $region50: #{tpu_custom_call.1} parent=0
    _
  %s12 = ssub.s32 1, %s10
  %s13 = scalar_select 0, %s12, %s10
  $region1: #{tpu_custom_call.1} parent=0
    #allocation2 [shape = 'u8[65536]{0}', space=vmem, size = 0x10000, scoped, tag = 'input window, operand 5, single buffered']
    #allocation3 [shape = 's32[1]{0}', space=sflag, size = 0x4, scoped, tag = 'scoped memory for tpu_custom_call.1']
    #allocation4 [shape = 's32[1]{0}', space=sflag, size = 0x4, scoped, tag = 'scoped memory for tpu_custom_call.1']
    #allocation5 [shape = 'u8[4096]{0}', space=vmem, size = 0x1000, scoped, tag = 'output window, operand 0, single buffered']
    %14 = vsyncpa [#allocation3], 0
    %15 = vsyncpa [#allocation4], 0
    // Predicated region
    $region2: #{tpu_custom_call.1} parent=1 // pred_check
      _
    $region3: #{tpu_custom_call.1} parent=1 // pred_check_branch
      %17 = sbr.rel (0) target = $region5
    $region4: #{tpu_custom_call.1} parent=1 // pred_region
      _
    $region5: #{tpu_custom_call.1} parent=1 // pred_fallthru
      _
    // Predicated region
    $region6: #{tpu_custom_call.1} parent=1 // pred_check
      _
    $region7: #{tpu_custom_call.1} parent=1 // pred_check_branch
      %19 = sbr.rel (0) target = $region9
    $region8: #{tpu_custom_call.1} parent=1 // pred_region
      _
    $region9: #{tpu_custom_call.1} parent=1 // pred_fallthru
      _
    // Predicated region
    $region10: #{tpu_custom_call.1} parent=1 // pred_check
      _
    $region11: #{tpu_custom_call.1} parent=1 // pred_check_branch
      %21 = sbr.rel (0) target = $region13
    $region12: #{tpu_custom_call.1} parent=1 // pred_region
      _
    $region13: #{tpu_custom_call.1} parent=1 // pred_fallthru
      _
    // Predicated region
    $region14: #{tpu_custom_call.1} parent=1 // pred_check
      _
    $region15: #{tpu_custom_call.1} parent=1 // pred_check_branch
      %23 = sbr.rel (0) target = $region17
    $region16: #{tpu_custom_call.1} parent=1 // pred_region
      _
    $region17: #{tpu_custom_call.1} parent=1 // pred_fallthru
      _
    // Predicated region
    $region18: #{tpu_custom_call.1} parent=1 // pred_check
      _
    $region19: #{tpu_custom_call.1} parent=1 // pred_check_branch
      %25 = sbr.rel (0) target = $region21
    $region20: #{tpu_custom_call.1} parent=1 // pred_region
      _
    $region21: #{tpu_custom_call.1} parent=1 // pred_fallthru
      _
    // Predicated region
    $region22: #{tpu_custom_call.1} parent=1 // pred_check
      _
    $region23: #{tpu_custom_call.1} parent=1 // pred_check_branch
      %27 = sbr.rel (0) target = $region25
    $region24: #{tpu_custom_call.1} parent=1 // pred_region
      %s29 = ssub.s32 2048, 2048
      %30 = vsyncadd [#allocation3], %s29
      %s31 = sshll.u32 [#allocation2], 4
      %s32 = int_to_ptr.vmem [resolvable:$true] %s31
      %37 = dma.hbm_to_vmem [thread:$0]  %s5, 2048, %s32, [#allocation3], 128, 128, 8
    $region25: #{tpu_custom_call.1} parent=1 // pred_fallthru
      _
    // Predicated region
    $region26: #{tpu_custom_call.1} parent=1 // pred_check
      _
    $region27: #{tpu_custom_call.1} parent=1 // pred_check_branch
      %39 = sbr.rel (0) target = $region29
    $region28: #{tpu_custom_call.1} parent=1 // pred_region
      _
    $region29: #{tpu_custom_call.1} parent=1 // pred_fallthru
      _
    // Predicated region
    $region30: #{tpu_custom_call.1} parent=1 // pred_check
      _
    $region31: #{tpu_custom_call.1} parent=1 // pred_check_branch
      %41 = sbr.rel (0) target = $region33
    $region32: #{tpu_custom_call.1} parent=1 // pred_region
      _
    $region33: #{tpu_custom_call.1} parent=1 // pred_fallthru
      _
    // Predicated region
    $region34: #{tpu_custom_call.1} parent=1 // pred_check
      _
    $region35: #{tpu_custom_call.1} parent=1 // pred_check_branch
      %43 = sbr.rel (0) target = $region37
    $region36: #{tpu_custom_call.1} parent=1 // pred_region
      _
    $region37: #{tpu_custom_call.1} parent=1 // pred_fallthru
      _
    // Predicated region
    $region38: #{tpu_custom_call.1} parent=1 // pred_check
      _
    $region39: #{tpu_custom_call.1} parent=1 // pred_check_branch
      %45 = sbr.rel (0) target = $region41
    $region40: #{tpu_custom_call.1} parent=1 // pred_region
      %46 = dma.done [#allocation3], 2048
    $region41: #{tpu_custom_call.1} parent=1 // pred_fallthru
      _
    %v47 = vld [vmem:[%s0] sm:$0xff]
    %v48 = vld [vmem:[%s1] sm:$0xff]
    %v49 = vld [vmem:[%s1 + $0x8] sm:$0xff]
    %v50 = vld [vmem:[%s1 + $0x10] sm:$0xff]
    %v51 = vld [vmem:[%s1 + $0x18] sm:$0xff]
    %v52 = vld [vmem:[%s2] sm:$0x1]
    %v54 = vlaneseq
    %v55 = vshrl.u32 %v54, 7
    %v56 = vsub.s32 0, %v55
    %v57 = vrot.slane %v52, %v56
    %vm59 = vcmask 261120
    %v61 = vsel %vm59, %v47, 0
    %63 = vmatprep.subr.mxu0 0.0
    %64 = vmatpush1.msra.mxu0 %v48
    %65 = vmatprep.subr.mxu0 0.0
    %66 = vmatpush1.msra.mxu0 %v49
    %67 = vmatprep.subr.mxu0 0.0
    %68 = vmatpush1.msra.mxu0 %v50
    %69 = vmatprep.subr.mxu0 0.0
    %70 = vmatpush1.msra.mxu0 %v51
    %71 = vmatprep.subr.mxu0 0.0
    %72 = vmatpush1.msra.mxu0 0.0
    %73 = vmatprep.subr.mxu0 0.0
    %74 = vmatpush1.msra.mxu0 0.0
    %75 = vmatprep.subr.mxu0 0.0
    %76 = vmatpush1.msra.mxu0 0.0
    %77 = vmatprep.subr.mxu0 0.0
    %78 = vmatpush1.msra.mxu0 0.0
    %79 = vmatprep.subr.mxu0 0.0
    %80 = vmatpush1.msra.mxu0 0.0
    %81 = vmatprep.subr.mxu0 0.0
    %82 = vmatpush1.msra.mxu0 0.0
    %83 = vmatprep.subr.mxu0 0.0
    %84 = vmatpush1.msra.mxu0 0.0
    %85 = vmatprep.subr.mxu0 0.0
    %86 = vmatpush1.msra.mxu0 0.0
    %87 = vmatprep.subr.mxu0 0.0
    %88 = vmatpush1.msra.mxu0 0.0
    %89 = vmatprep.subr.mxu0 0.0
    %90 = vmatpush1.msra.mxu0 0.0
    %91 = vmatprep.subr.mxu0 0.0
    %92 = vmatpush1.msra.mxu0 0.0
    %93 = vmatprep.subr.mxu0 0.0
    %94 = vmatpush1.msra.mxu0 0.0
    %95 = vmatprep.subr.mxu0 0.0
    %96 = vmatpush1.msra.mxu0 0.0
    %97 = vmatprep.subr.mxu0 0.0
    %98 = vmatpush1.msra.mxu0 0.0
    %99 = vmatprep.subr.mxu0 0.0
    %100 = vmatpush1.msra.mxu0 0.0
    %101 = vmatprep.subr.mxu0 0.0
    %102 = vmatpush1.msra.mxu0 0.0
    %103 = vmatprep.subr.mxu0 0.0
    %104 = vmatpush1.msra.mxu0 0.0
    %105 = vmatprep.subr.mxu0 0.0
    %106 = vmatpush1.msra.mxu0 0.0
    %107 = vmatprep.subr.mxu0 0.0
    %108 = vmatpush1.msra.mxu0 0.0
    %109 = vmatprep.subr.mxu0 0.0
    %110 = vmatpush1.msra.mxu0 0.0
    %111 = vmatprep.subr.mxu0 0.0
    %112 = vmatpush1.msra.mxu0 0.0
    %113 = vmatprep.subr.mxu0 0.0
    %114 = vmatpush1.msra.mxu0 0.0
    %115 = vmatprep.subr.mxu0 0.0
    %116 = vmatpush1.msra.mxu0 0.0
    %117 = vmatprep.subr.mxu0 0.0
    %118 = vmatpush1.msra.mxu0 0.0
    %119 = vmatprep.subr.mxu0 0.0
    %120 = vmatpush1.msra.mxu0 0.0
    %121 = vmatprep.subr.mxu0 0.0
    %122 = vmatpush1.msra.mxu0 0.0
    %123 = vmatprep.subr.mxu0 0.0
    %124 = vmatpush1.msra.mxu0 0.0
    %125 = vmatprep.subr.mxu0 0.0
    %126 = vmatpush1.msra.mxu0 0.0
    %127 = vmatprep.mubr.f32.mxu0 0.0
    %128 = vmatmul.mubr.f32.gmra.mrb[0].mxu0 %v61
    %v129 = vpop.f32.mrb[0].mxu0
    %v130 = vadd.f32 %v57, %v129
    %v131 = vpop.f32.mrb[0].mxu0
    %132 = vdwg.mxu0
    %v133 = vmul.f32 %v130, 0.01
    %v134 = vmax.f32 %v130, %v133
    %v135 = vld [vmem:[%s3] sm:$0xff]
    %v136 = vld [vmem:[%s3 + $0x8] sm:$0xff]
    %v137 = vld [vmem:[%s3 + $0x10] sm:$0xff]
    %v138 = vld [vmem:[%s3 + $0x18] sm:$0xff]
    %v139 = vld [vmem:[%s3 + $0x20] sm:$0xff]
    %v140 = vld [vmem:[%s3 + $0x28] sm:$0xff]
    %v141 = vld [vmem:[%s3 + $0x30] sm:$0xff]
    %v142 = vld [vmem:[%s3 + $0x38] sm:$0xff]
    %v143 = vld [vmem:[%s3 + $0x40] sm:$0xff]
    %v144 = vld [vmem:[%s3 + $0x48] sm:$0xff]
    %v145 = vld [vmem:[%s3 + $0x50] sm:$0xff]
    %v146 = vld [vmem:[%s3 + $0x58] sm:$0xff]
    %v147 = vld [vmem:[%s3 + $0x60] sm:$0xff]
    %v148 = vld [vmem:[%s3 + $0x68] sm:$0xff]
    %v149 = vld [vmem:[%s3 + $0x70] sm:$0xff]
    %v150 = vld [vmem:[%s3 + $0x78] sm:$0xff]
    %v151 = vld [vmem:[%s4] sm:$0x1]
    %v153 = vlaneseq
    %v154 = vshrl.u32 %v153, 7
    %v155 = vsub.s32 0, %v154
    %v156 = vrot.slane %v151, %v155
    %158 = vmatprep.subr.mxu0 0.0
    %159 = vmatpush1.msra.mxu0 %v135
    %160 = vmatprep.subr.mxu0 0.0
    %161 = vmatpush1.msra.mxu0 %v136
    %162 = vmatprep.subr.mxu0 0.0
    %163 = vmatpush1.msra.mxu0 %v137
    %164 = vmatprep.subr.mxu0 0.0
    %165 = vmatpush1.msra.mxu0 %v138
    %166 = vmatprep.subr.mxu0 0.0
    %167 = vmatpush1.msra.mxu0 %v139
    %168 = vmatprep.subr.mxu0 0.0
    %169 = vmatpush1.msra.mxu0 %v140
    %170 = vmatprep.subr.mxu0 0.0
    %171 = vmatpush1.msra.mxu0 %v141
    %172 = vmatprep.subr.mxu0 0.0
    %173 = vmatpush1.msra.mxu0 %v142
    %174 = vmatprep.subr.mxu0 0.0
    %175 = vmatpush1.msra.mxu0 %v143
    %176 = vmatprep.subr.mxu0 0.0
    %177 = vmatpush1.msra.mxu0 %v144
    %178 = vmatprep.subr.mxu0 0.0
    %179 = vmatpush1.msra.mxu0 %v145
    %180 = vmatprep.subr.mxu0 0.0
    %181 = vmatpush1.msra.mxu0 %v146
    %182 = vmatprep.subr.mxu0 0.0
    %183 = vmatpush1.msra.mxu0 %v147
    %184 = vmatprep.subr.mxu0 0.0
    %185 = vmatpush1.msra.mxu0 %v148
    %186 = vmatprep.subr.mxu0 0.0
    %187 = vmatpush1.msra.mxu0 %v149
    %188 = vmatprep.subr.mxu0 0.0
    %189 = vmatpush1.msra.mxu0 %v150
    %190 = vmatprep.subr.mxu0 0.0
    %191 = vmatpush1.msra.mxu0 0.0
    %192 = vmatprep.subr.mxu0 0.0
    %193 = vmatpush1.msra.mxu0 0.0
    %194 = vmatprep.subr.mxu0 0.0
    %195 = vmatpush1.msra.mxu0 0.0
    %196 = vmatprep.subr.mxu0 0.0
    %197 = vmatpush1.msra.mxu0 0.0
    %198 = vmatprep.subr.mxu0 0.0
    %199 = vmatpush1.msra.mxu0 0.0
    %200 = vmatprep.subr.mxu0 0.0
    %201 = vmatpush1.msra.mxu0 0.0
    %202 = vmatprep.subr.mxu0 0.0
    %203 = vmatpush1.msra.mxu0 0.0
    %204 = vmatprep.subr.mxu0 0.0
    %205 = vmatpush1.msra.mxu0 0.0
    %206 = vmatprep.subr.mxu0 0.0
    %207 = vmatpush1.msra.mxu0 0.0
    %208 = vmatprep.subr.mxu0 0.0
    %209 = vmatpush1.msra.mxu0 0.0
    %210 = vmatprep.subr.mxu0 0.0
    %211 = vmatpush1.msra.mxu0 0.0
    %212 = vmatprep.subr.mxu0 0.0
    %213 = vmatpush1.msra.mxu0 0.0
    %214 = vmatprep.subr.mxu0 0.0
    %215 = vmatpush1.msra.mxu0 0.0
    %216 = vmatprep.subr.mxu0 0.0
    %217 = vmatpush1.msra.mxu0 0.0
    %218 = vmatprep.subr.mxu0 0.0
    %219 = vmatpush1.msra.mxu0 0.0
    %220 = vmatprep.subr.mxu0 0.0
    %221 = vmatpush1.msra.mxu0 0.0
    %222 = vmatprep.mubr.f32.mxu0 0.0
    %223 = vmatmul.mubr.f32.gmra.mrb[0].mxu0 %v134
    %v224 = vpop.f32.mrb[0].mxu0
    %v225 = vadd.f32 %v156, %v224
    %v226 = vpop.f32.mrb[0].mxu0
    %227 = vdwg.mxu0
    %v228 = vmul.f32 %v225, 0.01
    %v229 = vmax.f32 %v225, %v228
    %v230 = vld [vmem:[#allocation2] sm:$0xff]
    %v231 = vld [vmem:[#allocation2 + $0x8] sm:$0xff]
    %v232 = vld [vmem:[#allocation2 + $0x10] sm:$0xff]
    %v233 = vld [vmem:[#allocation2 + $0x18] sm:$0xff]
    %v234 = vld [vmem:[#allocation2 + $0x20] sm:$0xff]
    %v235 = vld [vmem:[#allocation2 + $0x28] sm:$0xff]
    %v236 = vld [vmem:[#allocation2 + $0x30] sm:$0xff]
    %v237 = vld [vmem:[#allocation2 + $0x38] sm:$0xff]
    %v238 = vld [vmem:[#allocation2 + $0x40] sm:$0xff]
    %v239 = vld [vmem:[#allocation2 + $0x48] sm:$0xff]
    %v240 = vld [vmem:[#allocation2 + $0x50] sm:$0xff]
    %v241 = vld [vmem:[#allocation2 + $0x58] sm:$0xff]
    %v242 = vld [vmem:[#allocation2 + $0x60] sm:$0xff]
    %v243 = vld [vmem:[#allocation2 + $0x68] sm:$0xff]
    %v244 = vld [vmem:[#allocation2 + $0x70] sm:$0xff]
    %v245 = vld [vmem:[#allocation2 + $0x78] sm:$0xff]
    %v246 = vld [vmem:[%s6] sm:$0x1]
    %v248 = vlaneseq
    %v249 = vshrl.u32 %v248, 7
    %v250 = vsub.s32 0, %v249
    %v251 = vrot.slane %v246, %v250
    %253 = vmatprep.subr.mxu0 0.0
    %254 = vmatpush1.msra.mxu0 %v230
    %255 = vmatprep.subr.mxu0 0.0
    %256 = vmatpush1.msra.mxu0 %v231
    %257 = vmatprep.subr.mxu0 0.0
    %258 = vmatpush1.msra.mxu0 %v232
    %259 = vmatprep.subr.mxu0 0.0
    %260 = vmatpush1.msra.mxu0 %v233
    %261 = vmatprep.subr.mxu0 0.0
    %262 = vmatpush1.msra.mxu0 %v234
    %263 = vmatprep.subr.mxu0 0.0
    %264 = vmatpush1.msra.mxu0 %v235
    %265 = vmatprep.subr.mxu0 0.0
    %266 = vmatpush1.msra.mxu0 %v236
    %267 = vmatprep.subr.mxu0 0.0
    %268 = vmatpush1.msra.mxu0 %v237
    %269 = vmatprep.subr.mxu0 0.0
    %270 = vmatpush1.msra.mxu0 %v238
    %271 = vmatprep.subr.mxu0 0.0
    %272 = vmatpush1.msra.mxu0 %v239
    %273 = vmatprep.subr.mxu0 0.0
    %274 = vmatpush1.msra.mxu0 %v240
    %275 = vmatprep.subr.mxu0 0.0
    %276 = vmatpush1.msra.mxu0 %v241
    %277 = vmatprep.subr.mxu0 0.0
    %278 = vmatpush1.msra.mxu0 %v242
    %279 = vmatprep.subr.mxu0 0.0
    %280 = vmatpush1.msra.mxu0 %v243
    %281 = vmatprep.subr.mxu0 0.0
    %282 = vmatpush1.msra.mxu0 %v244
    %283 = vmatprep.subr.mxu0 0.0
    %284 = vmatpush1.msra.mxu0 %v245
    %285 = vmatprep.subr.mxu0 0.0
    %286 = vmatpush1.msra.mxu0 0.0
    %287 = vmatprep.subr.mxu0 0.0
    %288 = vmatpush1.msra.mxu0 0.0
    %289 = vmatprep.subr.mxu0 0.0
    %290 = vmatpush1.msra.mxu0 0.0
    %291 = vmatprep.subr.mxu0 0.0
    %292 = vmatpush1.msra.mxu0 0.0
    %293 = vmatprep.subr.mxu0 0.0
    %294 = vmatpush1.msra.mxu0 0.0
    %295 = vmatprep.subr.mxu0 0.0
    %296 = vmatpush1.msra.mxu0 0.0
    %297 = vmatprep.subr.mxu0 0.0
    %298 = vmatpush1.msra.mxu0 0.0
    %299 = vmatprep.subr.mxu0 0.0
    %300 = vmatpush1.msra.mxu0 0.0
    %301 = vmatprep.subr.mxu0 0.0
    %302 = vmatpush1.msra.mxu0 0.0
    %303 = vmatprep.subr.mxu0 0.0
    %304 = vmatpush1.msra.mxu0 0.0
    %305 = vmatprep.subr.mxu0 0.0
    %306 = vmatpush1.msra.mxu0 0.0
    %307 = vmatprep.subr.mxu0 0.0
    %308 = vmatpush1.msra.mxu0 0.0
    %309 = vmatprep.subr.mxu0 0.0
    %310 = vmatpush1.msra.mxu0 0.0
    %311 = vmatprep.subr.mxu0 0.0
    %312 = vmatpush1.msra.mxu0 0.0
    %313 = vmatprep.subr.mxu0 0.0
    %314 = vmatpush1.msra.mxu0 0.0
    %315 = vmatprep.subr.mxu0 0.0
    %316 = vmatpush1.msra.mxu0 0.0
    %317 = vmatprep.mubr.f32.mxu0 0.0
    %318 = vmatmul.mubr.f32.gmra.mrb[0].mxu0 %v229
    %v319 = vpop.f32.mrb[0].mxu0
    %v320 = vadd.f32 %v251, %v319
    %v321 = vpop.f32.mrb[0].mxu0
    %322 = vdwg.mxu0
    %v323 = vmul.f32 %v320, 0.01
    %v324 = vmax.f32 %v320, %v323
    %v325 = vld [vmem:[%s7] sm:$0xff]
    %v326 = vld [vmem:[%s7 + $0x8] sm:$0xff]
    %v327 = vld [vmem:[%s7 + $0x10] sm:$0xff]
    %v328 = vld [vmem:[%s7 + $0x18] sm:$0xff]
    %v329 = vld [vmem:[%s7 + $0x20] sm:$0xff]
    %v330 = vld [vmem:[%s7 + $0x28] sm:$0xff]
    %v331 = vld [vmem:[%s7 + $0x30] sm:$0xff]
    %v332 = vld [vmem:[%s7 + $0x38] sm:$0xff]
    %v333 = vld [vmem:[%s7 + $0x40] sm:$0xff]
    %v334 = vld [vmem:[%s7 + $0x48] sm:$0xff]
    %v335 = vld [vmem:[%s7 + $0x50] sm:$0xff]
    %v336 = vld [vmem:[%s7 + $0x58] sm:$0xff]
    %v337 = vld [vmem:[%s7 + $0x60] sm:$0xff]
    %v338 = vld [vmem:[%s7 + $0x68] sm:$0xff]
    %v339 = vld [vmem:[%s7 + $0x70] sm:$0xff]
    %v340 = vld [vmem:[%s7 + $0x78] sm:$0xff]
    %v341 = vld [vmem:[%s8] sm:$0x1]
    %v343 = vlaneseq
    %v344 = vshrl.u32 %v343, 7
    %v345 = vsub.s32 0, %v344
    %v346 = vrot.slane %v341, %v345
    %348 = vmatprep.subr.mxu0 0.0
    %349 = vmatpush1.msra.mxu0 %v325
    %350 = vmatprep.subr.mxu0 0.0
    %351 = vmatpush1.msra.mxu0 %v326
    %352 = vmatprep.subr.mxu0 0.0
    %353 = vmatpush1.msra.mxu0 %v327
    %354 = vmatprep.subr.mxu0 0.0
    %355 = vmatpush1.msra.mxu0 %v328
    %356 = vmatprep.subr.mxu0 0.0
    %357 = vmatpush1.msra.mxu0 %v329
    %358 = vmatprep.subr.mxu0 0.0
    %359 = vmatpush1.msra.mxu0 %v330
    %360 = vmatprep.subr.mxu0 0.0
    %361 = vmatpush1.msra.mxu0 %v331
    %362 = vmatprep.subr.mxu0 0.0
    %363 = vmatpush1.msra.mxu0 %v332
    %364 = vmatprep.subr.mxu0 0.0
    %365 = vmatpush1.msra.mxu0 %v333
    %366 = vmatprep.subr.mxu0 0.0
    %367 = vmatpush1.msra.mxu0 %v334
    %368 = vmatprep.subr.mxu0 0.0
    %369 = vmatpush1.msra.mxu0 %v335
    %370 = vmatprep.subr.mxu0 0.0
    %371 = vmatpush1.msra.mxu0 %v336
    %372 = vmatprep.subr.mxu0 0.0
    %373 = vmatpush1.msra.mxu0 %v337
    %374 = vmatprep.subr.mxu0 0.0
    %375 = vmatpush1.msra.mxu0 %v338
    %376 = vmatprep.subr.mxu0 0.0
    %377 = vmatpush1.msra.mxu0 %v339
    %378 = vmatprep.subr.mxu0 0.0
    %379 = vmatpush1.msra.mxu0 %v340
    %380 = vmatprep.subr.mxu0 0.0
    %381 = vmatpush1.msra.mxu0 0.0
    %382 = vmatprep.subr.mxu0 0.0
    %383 = vmatpush1.msra.mxu0 0.0
    %384 = vmatprep.subr.mxu0 0.0
    %385 = vmatpush1.msra.mxu0 0.0
    %386 = vmatprep.subr.mxu0 0.0
    %387 = vmatpush1.msra.mxu0 0.0
    %388 = vmatprep.subr.mxu0 0.0
    %389 = vmatpush1.msra.mxu0 0.0
    %390 = vmatprep.subr.mxu0 0.0
    %391 = vmatpush1.msra.mxu0 0.0
    %392 = vmatprep.subr.mxu0 0.0
    %393 = vmatpush1.msra.mxu0 0.0
    %394 = vmatprep.subr.mxu0 0.0
    %395 = vmatpush1.msra.mxu0 0.0
    %396 = vmatprep.subr.mxu0 0.0
    %397 = vmatpush1.msra.mxu0 0.0
    %398 = vmatprep.subr.mxu0 0.0
    %399 = vmatpush1.msra.mxu0 0.0
    %400 = vmatprep.subr.mxu0 0.0
    %401 = vmatpush1.msra.mxu0 0.0
    %402 = vmatprep.subr.mxu0 0.0
    %403 = vmatpush1.msra.mxu0 0.0
    %404 = vmatprep.subr.mxu0 0.0
    %405 = vmatpush1.msra.mxu0 0.0
    %406 = vmatprep.subr.mxu0 0.0
    %407 = vmatpush1.msra.mxu0 0.0
    %408 = vmatprep.subr.mxu0 0.0
    %409 = vmatpush1.msra.mxu0 0.0
    %410 = vmatprep.subr.mxu0 0.0
    %411 = vmatpush1.msra.mxu0 0.0
    %412 = vmatprep.mubr.f32.mxu0 0.0
    %413 = vmatmul.mubr.f32.gmra.mrb[0].mxu0 %v324
    %v414 = vpop.f32.mrb[0].mxu0
    %v415 = vadd.f32 %v346, %v414
    %v416 = vpop.f32.mrb[0].mxu0
    %417 = vdwg.mxu0
    %vm418 = vcmask 285696
    %419 = vst.msk [vmem:[#allocation5] sm:$0xff] %vm418, %v415
    // Predicated region
    $region42: #{tpu_custom_call.1} parent=1 // pred_check
      _
    $region43: #{tpu_custom_call.1} parent=1 // pred_check_branch
      %421 = sbr.rel (0) target = $region45
    $region44: #{tpu_custom_call.1} parent=1 // pred_region
      %s423 = ssub.s32 128, 128
      %424 = vsyncadd [#allocation4], %s423
      %s426 = sshll.u32 [#allocation5], 4
      %s427 = int_to_ptr.vmem [resolvable:$true] %s426
      %429 = dma.vmem_to_hbm [thread:$0]  %s427, 128, %s9, [#allocation4]
    $region45: #{tpu_custom_call.1} parent=1 // pred_fallthru
      _
    // Predicated region
    $region46: #{tpu_custom_call.1} parent=1 // pred_check
      _
    $region47: #{tpu_custom_call.1} parent=1 // pred_check_branch
      %431 = sbr.rel (0) target = $region49
    $region48: #{tpu_custom_call.1} parent=1 // pred_region
      %432 = dma.done [#allocation4], 128
    $region49: #{tpu_custom_call.1} parent=1 // pred_fallthru
      _
    %433 = vsyncpa [#allocation3], 1
    %434 = vsyncpa [#allocation4], 1

</llo_original>
